<compile_context>
chip_gen: v6e
topology: v6e:2x2x1
jax: 0.10.0
libtpu: 0.0.40
codegen_flags: <defaults>
</compile_context>

<pallas_src>
import functools
from typing import NamedTuple

import jax
import jax.numpy as jnp
from jax import lax
from jax.experimental import pallas as pl
from jax.experimental.pallas import tpu as pltpu

# Explicit VMEM budget: 48 MiB limit is safe on v5e/v6e (128 MiB physical) and v7x
# (64 MiB physical); block sizes are chosen so double-buffered blocks stay <= 24 MiB.
_VMEM_LIMIT_BYTES = 48 * 1024 * 1024
_VMEM_BLOCK_BUDGET_BYTES = 24 * 1024 * 1024


# ---------------------------------------------------------------------------
# Kernels
# ---------------------------------------------------------------------------
def _spectral_mxu_kernel(x_ref, w_ref, o_ref):
    """MXU path: batched real matmul with the complex product folded into w.

    x_ref: (Mt, B, 2*Cin)   w_ref: (Mt, 2*Cin, 2*Cout)   o_ref: (Mt, B, 2*Cout)
    One wide (lane-dense) store of the whole block; no per-mode Python loop.
    """
    o_ref[...] = jnp.einsum(
        "mbi,mio->mbo", x_ref[...], w_ref[...],
        preferred_element_type=jnp.float32)


def _spectral_vpu_kernel(xr_ref, xi_ref, wr_ref, wi_ref, or_ref, oi_ref):
    """VPU path (tiny channels): accumulate over Cin; plain 4-mult complex product.

    xr/xi: (B, Cin, M)   wr/wi: (Cin, Cout, M)   or/oi: (B, Cout, M)
    Dispatch guarantees Cin < 16 here, so the static unroll stays short.
    Modes sit on the lane axis (lane-dense whenever modes >= 128, e.g. modes=256).
    """
    cin = xr_ref.shape[1]
    acc_r = jnp.zeros(or_ref.shape, jnp.float32)
    acc_i = jnp.zeros(oi_ref.shape, jnp.float32)
    for i in range(cin):
        xr_i = xr_ref[:, i:i + 1, :]      # (B, 1, M)
        xi_i = xi_ref[:, i:i + 1, :]
        wr_i = wr_ref[i][None, :, :]      # (1, Cout, M)
        wi_i = wi_ref[i][None, :, :]
        acc_r = acc_r + (xr_i * wr_i - xi_i * wi_i)
        acc_i = acc_i + (xr_i * wi_i + xi_i * wr_i)
    or_ref[...] = acc_r
    oi_ref[...] = acc_i


# ---------------------------------------------------------------------------
# Weight preparation (done ONCE, hoisted out of the per-call path)
# ---------------------------------------------------------------------------
class PreparedSpectralWeights(NamedTuple):
    path: str       # "mxu" or "vpu" (static)
    modes: int      # static
    cout: int       # static (un-padded out channels)
    arrays: tuple   # ("mxu": (w_packed,))  ("vpu": (wr, wi))


def prepare_spectral_weights(w_re, w_im, modes):
    """Pack/transpose/pad the spectral weights once ("module init" time)."""
    cin, cout, m_w = w_re.shape
    assert m_w == modes and w_im.shape == w_re.shape
    w_re = jnp.asarray(w_re, jnp.float32)
    w_im = jnp.asarray(w_im, jnp.float32)

    if max(cin, cout) < 16:
        # VPU layout: keep (Cin, Cout, modes); no mode padding.
        return PreparedSpectralWeights("vpu", modes, cout, (w_re, w_im))

    # MXU layout: a single packed real weight of shape (modes_pad, 2*cin_p, 2*cout_p):
    #   rows [0:cin_p)        (xr rows):  [ wr | wi ]
    #   rows [cin_p:2*cin_p)  (xi rows):  [-wi | wr ]
    cin_p = ((cin + 3) // 4) * 4          # 2*cin_p multiple of 8  (clean sublanes)
    cout_p = ((cout + 63) // 64) * 64     # 2*cout_p multiple of 128 (lane-dense stores)
    modes_pad = ((modes + 7) // 8) * 8

    wr = jnp.transpose(w_re, (2, 0, 1))   # (modes, cin, cout)
    wi = jnp.transpose(w_im, (2, 0, 1))
    pad = ((0, modes_pad - modes), (0, cin_p - cin), (0, cout_p - cout))
    wr = jnp.pad(wr, pad)
    wi = jnp.pad(wi, pad)
    top = jnp.concatenate([wr, wi], axis=2)
    bot = jnp.concatenate([-wi, wr], axis=2)
    w_packed = jnp.concatenate([top, bot], axis=1)   # (modes_pad, 2cin_p, 2cout_p)
    return PreparedSpectralWeights("mxu", modes, cout, (w_packed,))


# ---------------------------------------------------------------------------
# Forward wrappers
# ---------------------------------------------------------------------------
@functools.partial(jax.jit, static_argnames=("modes", "cout"))
def _spectral_conv1d_mxu(x, w_packed, *, modes, cout):
    B, cin, N = x.shape
    modes_pad, two_cin, two_cout = w_packed.shape
    cin_p = two_cin // 2
    cout_p = two_cout // 2
    nfreq = N // 2 + 1
    m = min(modes, nfreq)

    # --- rfft + relayout to packed (modes_pad, B, 2*cin_p) = [xr | xi]  (glue; XLA fuses)
    xk = jnp.fft.rfft(x.astype(jnp.float32), axis=-1)[:, :, :m]   # (B, cin, m) c64
    xr = jnp.real(xk)
    xi = jnp.imag(xk)
    if cin_p != cin:
        cpad = ((0, 0), (0, cin_p - cin), (0, 0))
        xr = jnp.pad(xr, cpad)
        xi = jnp.pad(xi, cpad)
    x_cat = jnp.concatenate([xr, xi], axis=1)                     # (B, 2cin_p, m)
    x_cat = jnp.transpose(x_cat, (2, 0, 1))                       # (m, B, 2cin_p)
    x_cat = jnp.pad(x_cat, ((0, modes_pad - m), (0, 0), (0, 0)))

    # --- mode tile: largest of {32,16,8} dividing modes_pad whose double-buffered
    #     blocks fit the VMEM budget; prefer >= 2 mode blocks so a 2nd TensorCore
    #     (v7x) gets work.  No batch split: keep the full B as the matmul M dim.
    def blk_bytes(mt):
        return 8 * mt * (B * two_cin + two_cin * two_cout + B * two_cout)  # f32, 2x buf
    mode_tile = 8
    for cand in (32, 16):
        if (modes_pad % cand == 0 and modes_pad // cand >= 2
                and blk_bytes(cand) <= _VMEM_BLOCK_BUDGET_BYTES):
            mode_tile = cand
            break

    grid = (modes_pad // mode_tile,)
    out = pl.pallas_call(
        _spectral_mxu_kernel,
        out_shape=jax.ShapeDtypeStruct((modes_pad, B, two_cout), jnp.float32),
        grid=grid,
        in_specs=[pl.BlockSpec((mode_tile, B, two_cin), lambda km: (km, 0, 0)),
                  pl.BlockSpec((mode_tile, two_cin, two_cout), lambda km: (km, 0, 0))],
        out_specs=pl.BlockSpec((mode_tile, B, two_cout), lambda km: (km, 0, 0)),
        compiler_params=pltpu.CompilerParams(
            dimension_semantics=("parallel",),
            vmem_limit_bytes=_VMEM_LIMIT_BYTES),
    )(x_cat, w_packed)

    # --- re/im live in disjoint lane halves of the packed output; assemble + irfft
    mixed = lax.complex(out[:m, :, :cout], out[:m, :, cout_p:cout_p + cout])  # (m,B,cout)
    out_ft = jnp.pad(mixed, ((0, nfreq - m), (0, 0), (0, 0)))                 # (nfreq,B,cout)
    out_ft = jnp.transpose(out_ft, (1, 2, 0))                                 # (B,cout,nfreq)
    return jnp.fft.irfft(out_ft, n=N, axis=-1).astype(jnp.float32)


@functools.partial(jax.jit, static_argnames=("modes",))
def _spectral_conv1d_vpu(x, wr, wi, *, modes):
    B, cin, N = x.shape
    cout = wr.shape[1]
    nfreq = N // 2 + 1
    m = min(modes, nfreq)

    x_ft = jnp.fft.rfft(x.astype(jnp.float32), axis=-1)           # (B, cin, nfreq) c64
    xk = x_ft[:, :, :m]
    pad = modes - m  # usually 0
    xr = jnp.pad(jnp.real(xk), ((0, 0), (0, 0), (0, pad)))
    xi = jnp.pad(jnp.imag(xk), ((0, 0), (0, 0), (0, pad)))

    x_spec = pl.BlockSpec((B, cin, modes), lambda i: (0, 0, 0))
    w_spec = pl.BlockSpec((cin, cout, modes), lambda i: (0, 0, 0))
    o_spec = pl.BlockSpec((B, cout, modes), lambda i: (0, 0, 0))
    out_r, out_i = pl.pallas_call(
        _spectral_vpu_kernel,
        out_shape=(jax.ShapeDtypeStruct((B, cout, modes), jnp.float32),
                   jax.ShapeDtypeStruct((B, cout, modes), jnp.float32)),
        grid=(1,),
        in_specs=[x_spec, x_spec, w_spec, w_spec],
        out_specs=(o_spec, o_spec),
        compiler_params=pltpu.CompilerParams(
            dimension_semantics=("arbitrary",),
            vmem_limit_bytes=_VMEM_LIMIT_BYTES),
    )(xr, xi, wr, wi)

    mixed = lax.complex(out_r[:, :, :m], out_i[:, :, :m])         # (B, cout, m)
    out_ft = jnp.pad(mixed, ((0, 0), (0, 0), (0, nfreq - m)))     # (B, cout, nfreq)
    return jnp.fft.irfft(out_ft, n=N, axis=-1).astype(jnp.float32)


def spectral_conv1d(x, prepared: PreparedSpectralWeights):
    """Forward pass of SpectralConv1d. x: (B, Cin, N) float32 -> (B, Cout, N)."""
    if prepared.path == "mxu":
        (w_packed,) = prepared.arrays
        return _spectral_conv1d_mxu(x, w_packed, modes=prepared.modes,
                                    cout=prepared.cout)
    wr, wi = prepared.arrays
    return _spectral_conv1d_vpu(x, wr, wi, modes=prepared.modes)


# ---------------------------------------------------------------------------
# Pure-JAX reference (matches the PyTorch forward)
# ---------------------------------------------------------------------------
def _reference(x, w_re, w_im, modes):
    B, cin, N = x.shape
    cout = w_re.shape[1]
    nfreq = N // 2 + 1
    m = min(modes, nfreq)
    w = (w_re + 1j * w_im).astype(jnp.complex64)
    x_ft = jnp.fft.rfft(x, axis=-1)
    mixed = jnp.einsum("bix,iox->box", x_ft[:, :, :m], w[:, :, :m])
    out_ft = jnp.zeros((B, cout, nfreq), dtype=jnp.complex64).at[:, :, :m].set(mixed)
    return jnp.fft.irfft(out_ft, n=N, axis=-1)


def _run_case(key, B, cin, cout, N, modes):
    k1, k2, k3 = jax.random.split(key, 3)
    x = jax.random.normal(k1, (B, cin, N), dtype=jnp.float32)
    scale = 1.0 / (cin * cout)
    w_re = scale * jax.random.uniform(k2, (cin, cout, modes), dtype=jnp.float32)
    w_im = scale * jax.random.uniform(k3, (cin, cout, modes), dtype=jnp.float32)

    prep = prepare_spectral_weights(w_re, w_im, modes)   # hoisted, once
    out = jax.block_until_ready(spectral_conv1d(x, prep))
    ref = jax.block_until_ready(_reference(x, w_re, w_im, modes))
    assert out.shape == (B, cout, N), (out.shape, (B, cout, N))
    assert jnp.allclose(out, ref, atol=1e-4, rtol=1e-3), (
        f"mismatch ({prep.path} path): max err "
        f"{float(jnp.max(jnp.abs(out - ref)))}")
    return prep.path


if __name__ == "__main__":
    key = jax.random.PRNGKey(0)
    ka, kb, kc = jax.random.split(key, 3)

    # test 1: tiny channels -> VPU accumulation path
    p1 = _run_case(ka, B=2, cin=4, cout=4, N=16, modes=8)
    assert p1 == "vpu"

    # test 2: wider channels -> MXU packed-matmul path (2*Cout padded to 128 lanes)
    p2 = _run_case(kb, B=4, cin=32, cout=32, N=64, modes=16)
    assert p2 == "mxu"

    # test 3: asymmetric channels + non-multiple-of-8 modes -> MXU path with Cin/Cout
    #         padding and mode padding exercised
    p3 = _run_case(kc, B=2, cin=16, cout=8, N=16, modes=5)
    assert p3 == "mxu"

    print("KERNEL_OK")
</pallas_src>

<mosaic_0001>
module attributes {stable_mosaic.version = 11 : i64} {
  func.func @_spectral_vpu_kernel(%arg0: i32, %arg1: memref<2x4x8xf32, #tpu.memory_space<vmem>>, %arg2: memref<2x4x8xf32, #tpu.memory_space<vmem>>, %arg3: memref<4x4x8xf32, #tpu.memory_space<vmem>>, %arg4: memref<4x4x8xf32, #tpu.memory_space<vmem>>, %arg5: memref<2x4x8xf32, #tpu.memory_space<vmem>>, %arg6: memref<2x4x8xf32, #tpu.memory_space<vmem>>) attributes {dimension_semantics = [#tpu.dimension_semantics<arbitrary>], iteration_bounds = array<i64: 1>, scalar_prefetch = 0 : i64, scratch_operands = 0 : i64, tpu.core_type = #tpu.core_type<tc>, window_params = [{pipeline_mode = #tpu.pipeline_mode<synchronous>, transform_indices = @transform_0, window_bounds = array<i64: 2, 4, 8>}, {pipeline_mode = #tpu.pipeline_mode<synchronous>, transform_indices = @transform_1, window_bounds = array<i64: 2, 4, 8>}, {pipeline_mode = #tpu.pipeline_mode<synchronous>, transform_indices = @transform_2, window_bounds = array<i64: 4, 4, 8>}, {pipeline_mode = #tpu.pipeline_mode<synchronous>, transform_indices = @transform_3, window_bounds = array<i64: 4, 4, 8>}, {pipeline_mode = #tpu.pipeline_mode<synchronous>, transform_indices = @transform_4, window_bounds = array<i64: 2, 4, 8>}, {pipeline_mode = #tpu.pipeline_mode<synchronous>, transform_indices = @transform_5, window_bounds = array<i64: 2, 4, 8>}]} {
    %cst = arith.constant 0.000000e+00 : f32
    %0 = vector.broadcast %cst : f32 to vector<2x4x8xf32>
    %cst_0 = arith.constant 0.000000e+00 : f32
    %1 = vector.broadcast %cst_0 : f32 to vector<2x4x8xf32>
    %c0 = arith.constant 0 : index
    %c0_1 = arith.constant 0 : index
    %c0_2 = arith.constant 0 : index
    %2 = vector.load %arg1[%c0, %c0_1, %c0_2] : memref<2x4x8xf32, #tpu.memory_space<vmem>>, vector<2x1x8xf32>
    %c0_3 = arith.constant 0 : index
    %c0_4 = arith.constant 0 : index
    %c0_5 = arith.constant 0 : index
    %3 = vector.load %arg2[%c0_3, %c0_4, %c0_5] : memref<2x4x8xf32, #tpu.memory_space<vmem>>, vector<2x1x8xf32>
    %c0_6 = arith.constant 0 : index
    %c0_7 = arith.constant 0 : index
    %c0_8 = arith.constant 0 : index
    %4 = vector.load %arg3[%c0_6, %c0_7, %c0_8] : memref<4x4x8xf32, #tpu.memory_space<vmem>>, vector<1x4x8xf32>
    %5 = vector.shape_cast %4 : vector<1x4x8xf32> to vector<4x8xf32>
    %6 = vector.shape_cast %5 : vector<4x8xf32> to vector<1x4x8xf32>
    %c0_9 = arith.constant 0 : index
    %c0_10 = arith.constant 0 : index
    %c0_11 = arith.constant 0 : index
    %7 = vector.load %arg4[%c0_9, %c0_10, %c0_11] : memref<4x4x8xf32, #tpu.memory_space<vmem>>, vector<1x4x8xf32>
    %8 = vector.shape_cast %7 : vector<1x4x8xf32> to vector<4x8xf32>
    %9 = vector.shape_cast %8 : vector<4x8xf32> to vector<1x4x8xf32>
    %10 = vector.broadcast %2 : vector<2x1x8xf32> to vector<2x4x8xf32>
    %11 = vector.broadcast %6 : vector<1x4x8xf32> to vector<2x4x8xf32>
    %12 = arith.mulf %10, %11 : vector<2x4x8xf32>
    %13 = vector.broadcast %3 : vector<2x1x8xf32> to vector<2x4x8xf32>
    %14 = vector.broadcast %9 : vector<1x4x8xf32> to vector<2x4x8xf32>
    %15 = arith.mulf %13, %14 : vector<2x4x8xf32>
    %16 = arith.subf %12, %15 : vector<2x4x8xf32>
    %17 = arith.addf %0, %16 : vector<2x4x8xf32>
    %18 = vector.broadcast %2 : vector<2x1x8xf32> to vector<2x4x8xf32>
    %19 = vector.broadcast %9 : vector<1x4x8xf32> to vector<2x4x8xf32>
    %20 = arith.mulf %18, %19 : vector<2x4x8xf32>
    %21 = vector.broadcast %3 : vector<2x1x8xf32> to vector<2x4x8xf32>
    %22 = vector.broadcast %6 : vector<1x4x8xf32> to vector<2x4x8xf32>
    %23 = arith.mulf %21, %22 : vector<2x4x8xf32>
    %24 = arith.addf %20, %23 : vector<2x4x8xf32>
    %25 = arith.addf %1, %24 : vector<2x4x8xf32>
    %c0_12 = arith.constant 0 : index
    %c1 = arith.constant 1 : index
    %c0_13 = arith.constant 0 : index
    %26 = vector.load %arg1[%c0_12, %c1, %c0_13] : memref<2x4x8xf32, #tpu.memory_space<vmem>>, vector<2x1x8xf32>
    %c0_14 = arith.constant 0 : index
    %c1_15 = arith.constant 1 : index
    %c0_16 = arith.constant 0 : index
    %27 = vector.load %arg2[%c0_14, %c1_15, %c0_16] : memref<2x4x8xf32, #tpu.memory_space<vmem>>, vector<2x1x8xf32>
    %c1_17 = arith.constant 1 : index
    %c0_18 = arith.constant 0 : index
    %c0_19 = arith.constant 0 : index
    %28 = vector.load %arg3[%c1_17, %c0_18, %c0_19] : memref<4x4x8xf32, #tpu.memory_space<vmem>>, vector<1x4x8xf32>
    %29 = vector.shape_cast %28 : vector<1x4x8xf32> to vector<4x8xf32>
    %30 = vector.shape_cast %29 : vector<4x8xf32> to vector<1x4x8xf32>
    %c1_20 = arith.constant 1 : index
    %c0_21 = arith.constant 0 : index
    %c0_22 = arith.constant 0 : index
    %31 = vector.load %arg4[%c1_20, %c0_21, %c0_22] : memref<4x4x8xf32, #tpu.memory_space<vmem>>, vector<1x4x8xf32>
    %32 = vector.shape_cast %31 : vector<1x4x8xf32> to vector<4x8xf32>
    %33 = vector.shape_cast %32 : vector<4x8xf32> to vector<1x4x8xf32>
    %34 = vector.broadcast %26 : vector<2x1x8xf32> to vector<2x4x8xf32>
    %35 = vector.broadcast %30 : vector<1x4x8xf32> to vector<2x4x8xf32>
    %36 = arith.mulf %34, %35 : vector<2x4x8xf32>
    %37 = vector.broadcast %27 : vector<2x1x8xf32> to vector<2x4x8xf32>
    %38 = vector.broadcast %33 : vector<1x4x8xf32> to vector<2x4x8xf32>
    %39 = arith.mulf %37, %38 : vector<2x4x8xf32>
    %40 = arith.subf %36, %39 : vector<2x4x8xf32>
    %41 = arith.addf %17, %40 : vector<2x4x8xf32>
    %42 = vector.broadcast %26 : vector<2x1x8xf32> to vector<2x4x8xf32>
    %43 = vector.broadcast %33 : vector<1x4x8xf32> to vector<2x4x8xf32>
    %44 = arith.mulf %42, %43 : vector<2x4x8xf32>
    %45 = vector.broadcast %27 : vector<2x1x8xf32> to vector<2x4x8xf32>
    %46 = vector.broadcast %30 : vector<1x4x8xf32> to vector<2x4x8xf32>
    %47 = arith.mulf %45, %46 : vector<2x4x8xf32>
    %48 = arith.addf %44, %47 : vector<2x4x8xf32>
    %49 = arith.addf %25, %48 : vector<2x4x8xf32>
    %c0_23 = arith.constant 0 : index
    %c2 = arith.constant 2 : index
    %c0_24 = arith.constant 0 : index
    %50 = vector.load %arg1[%c0_23, %c2, %c0_24] : memref<2x4x8xf32, #tpu.memory_space<vmem>>, vector<2x1x8xf32>
    %c0_25 = arith.constant 0 : index
    %c2_26 = arith.constant 2 : index
    %c0_27 = arith.constant 0 : index
    %51 = vector.load %arg2[%c0_25, %c2_26, %c0_27] : memref<2x4x8xf32, #tpu.memory_space<vmem>>, vector<2x1x8xf32>
    %c2_28 = arith.constant 2 : index
    %c0_29 = arith.constant 0 : index
    %c0_30 = arith.constant 0 : index
    %52 = vector.load %arg3[%c2_28, %c0_29, %c0_30] : memref<4x4x8xf32, #tpu.memory_space<vmem>>, vector<1x4x8xf32>
    %53 = vector.shape_cast %52 : vector<1x4x8xf32> to vector<4x8xf32>
    %54 = vector.shape_cast %53 : vector<4x8xf32> to vector<1x4x8xf32>
    %c2_31 = arith.constant 2 : index
    %c0_32 = arith.constant 0 : index
    %c0_33 = arith.constant 0 : index
    %55 = vector.load %arg4[%c2_31, %c0_32, %c0_33] : memref<4x4x8xf32, #tpu.memory_space<vmem>>, vector<1x4x8xf32>
    %56 = vector.shape_cast %55 : vector<1x4x8xf32> to vector<4x8xf32>
    %57 = vector.shape_cast %56 : vector<4x8xf32> to vector<1x4x8xf32>
    %58 = vector.broadcast %50 : vector<2x1x8xf32> to vector<2x4x8xf32>
    %59 = vector.broadcast %54 : vector<1x4x8xf32> to vector<2x4x8xf32>
    %60 = arith.mulf %58, %59 : vector<2x4x8xf32>
    %61 = vector.broadcast %51 : vector<2x1x8xf32> to vector<2x4x8xf32>
    %62 = vector.broadcast %57 : vector<1x4x8xf32> to vector<2x4x8xf32>
    %63 = arith.mulf %61, %62 : vector<2x4x8xf32>
    %64 = arith.subf %60, %63 : vector<2x4x8xf32>
    %65 = arith.addf %41, %64 : vector<2x4x8xf32>
    %66 = vector.broadcast %50 : vector<2x1x8xf32> to vector<2x4x8xf32>
    %67 = vector.broadcast %57 : vector<1x4x8xf32> to vector<2x4x8xf32>
    %68 = arith.mulf %66, %67 : vector<2x4x8xf32>
    %69 = vector.broadcast %51 : vector<2x1x8xf32> to vector<2x4x8xf32>
    %70 = vector.broadcast %54 : vector<1x4x8xf32> to vector<2x4x8xf32>
    %71 = arith.mulf %69, %70 : vector<2x4x8xf32>
    %72 = arith.addf %68, %71 : vector<2x4x8xf32>
    %73 = arith.addf %49, %72 : vector<2x4x8xf32>
    %c0_34 = arith.constant 0 : index
    %c3 = arith.constant 3 : index
    %c0_35 = arith.constant 0 : index
    %74 = vector.load %arg1[%c0_34, %c3, %c0_35] : memref<2x4x8xf32, #tpu.memory_space<vmem>>, vector<2x1x8xf32>
    %c0_36 = arith.constant 0 : index
    %c3_37 = arith.constant 3 : index
    %c0_38 = arith.constant 0 : index
    %75 = vector.load %arg2[%c0_36, %c3_37, %c0_38] : memref<2x4x8xf32, #tpu.memory_space<vmem>>, vector<2x1x8xf32>
    %c3_39 = arith.constant 3 : index
    %c0_40 = arith.constant 0 : index
    %c0_41 = arith.constant 0 : index
    %76 = vector.load %arg3[%c3_39, %c0_40, %c0_41] : memref<4x4x8xf32, #tpu.memory_space<vmem>>, vector<1x4x8xf32>
    %77 = vector.shape_cast %76 : vector<1x4x8xf32> to vector<4x8xf32>
    %78 = vector.shape_cast %77 : vector<4x8xf32> to vector<1x4x8xf32>
    %c3_42 = arith.constant 3 : index
    %c0_43 = arith.constant 0 : index
    %c0_44 = arith.constant 0 : index
    %79 = vector.load %arg4[%c3_42, %c0_43, %c0_44] : memref<4x4x8xf32, #tpu.memory_space<vmem>>, vector<1x4x8xf32>
    %80 = vector.shape_cast %79 : vector<1x4x8xf32> to vector<4x8xf32>
    %81 = vector.shape_cast %80 : vector<4x8xf32> to vector<1x4x8xf32>
    %82 = vector.broadcast %74 : vector<2x1x8xf32> to vector<2x4x8xf32>
    %83 = vector.broadcast %78 : vector<1x4x8xf32> to vector<2x4x8xf32>
    %84 = arith.mulf %82, %83 : vector<2x4x8xf32>
    %85 = vector.broadcast %75 : vector<2x1x8xf32> to vector<2x4x8xf32>
    %86 = vector.broadcast %81 : vector<1x4x8xf32> to vector<2x4x8xf32>
    %87 = arith.mulf %85, %86 : vector<2x4x8xf32>
    %88 = arith.subf %84, %87 : vector<2x4x8xf32>
    %89 = arith.addf %65, %88 : vector<2x4x8xf32>
    %90 = vector.broadcast %74 : vector<2x1x8xf32> to vector<2x4x8xf32>
    %91 = vector.broadcast %81 : vector<1x4x8xf32> to vector<2x4x8xf32>
    %92 = arith.mulf %90, %91 : vector<2x4x8xf32>
    %93 = vector.broadcast %75 : vector<2x1x8xf32> to vector<2x4x8xf32>
    %94 = vector.broadcast %78 : vector<1x4x8xf32> to vector<2x4x8xf32>
    %95 = arith.mulf %93, %94 : vector<2x4x8xf32>
    %96 = arith.addf %92, %95 : vector<2x4x8xf32>
    %97 = arith.addf %73, %96 : vector<2x4x8xf32>
    %c0_45 = arith.constant 0 : index
    %c0_46 = arith.constant 0 : index
    %c0_47 = arith.constant 0 : index
    %98 = vector.load %arg5[%c0_45, %c0_46, %c0_47] : memref<2x4x8xf32, #tpu.memory_space<vmem>>, vector<2x4x8xf32>
    tpu.vector_store %arg5[%c0_45, %c0_46, %c0_47], %89 {strides = array<i32>} : memref<2x4x8xf32, #tpu.memory_space<vmem>>, vector<2x4x8xf32>,
    %c0_48 = arith.constant 0 : index
    %c0_49 = arith.constant 0 : index
    %c0_50 = arith.constant 0 : index
    %99 = vector.load %arg6[%c0_48, %c0_49, %c0_50] : memref<2x4x8xf32, #tpu.memory_space<vmem>>, vector<2x4x8xf32>
    tpu.vector_store %arg6[%c0_48, %c0_49, %c0_50], %97 {strides = array<i32>} : memref<2x4x8xf32, #tpu.memory_space<vmem>>, vector<2x4x8xf32>,
    return
  }
  func.func @transform_0(%arg0: i32) -> (i32, i32, i32) {
    %c0_i32 = arith.constant 0 : i32
    %c0_i32_0 = arith.constant 0 : i32
    %c0_i32_1 = arith.constant 0 : i32
    %c0_i32_2 = arith.constant 0 : i32
    return %c0_i32, %c0_i32_0, %c0_i32_1 : i32, i32, i32
  }
  func.func @transform_1(%arg0: i32) -> (i32, i32, i32) {
    %c0_i32 = arith.constant 0 : i32
    %c0_i32_0 = arith.constant 0 : i32
    %c0_i32_1 = arith.constant 0 : i32
    %c0_i32_2 = arith.constant 0 : i32
    return %c0_i32, %c0_i32_0, %c0_i32_1 : i32, i32, i32
  }
  func.func @transform_2(%arg0: i32) -> (i32, i32, i32) {
    %c0_i32 = arith.constant 0 : i32
    %c0_i32_0 = arith.constant 0 : i32
    %c0_i32_1 = arith.constant 0 : i32
    %c0_i32_2 = arith.constant 0 : i32
    return %c0_i32, %c0_i32_0, %c0_i32_1 : i32, i32, i32
  }
  func.func @transform_3(%arg0: i32) -> (i32, i32, i32) {
    %c0_i32 = arith.constant 0 : i32
    %c0_i32_0 = arith.constant 0 : i32
    %c0_i32_1 = arith.constant 0 : i32
    %c0_i32_2 = arith.constant 0 : i32
    return %c0_i32, %c0_i32_0, %c0_i32_1 : i32, i32, i32
  }
  func.func @transform_4(%arg0: i32) -> (i32, i32, i32) {
    %c0_i32 = arith.constant 0 : i32
    %c0_i32_0 = arith.constant 0 : i32
    %c0_i32_1 = arith.constant 0 : i32
    %c0_i32_2 = arith.constant 0 : i32
    return %c0_i32, %c0_i32_0, %c0_i32_1 : i32, i32, i32
  }
  func.func @transform_5(%arg0: i32) -> (i32, i32, i32) {
    %c0_i32 = arith.constant 0 : i32
    %c0_i32_0 = arith.constant 0 : i32
    %c0_i32_1 = arith.constant 0 : i32
    %c0_i32_2 = arith.constant 0 : i32
    return %c0_i32, %c0_i32_0, %c0_i32_1 : i32, i32, i32
  }
}

</mosaic_0001>

<llo_original>
// kernel: reverse.1
$region0: #{reverse.1}
  %s0 = inlined_call_operand.vmem [shape: f32[2,4,7], index: 0, kind: input, shape index: {}]
  %s1 = inlined_call_operand.vmem [shape: f32[2,4,7], index: 1, kind: output, shape index: {}]
  %v2 = vlaneseq
  %v3 = vsub.s32 6, %v2
  %4 = vset.pattern.permute.xlu0 %v3
  $region1: #{reverse.1} parent=0
    #allocation0 [shape = 'u8[8192]{0}', space=vmem, size = 0x2000, scoped, tag = 'operand span for operand 0']
    #allocation1 [shape = 'u8[4096]{0}', space=vmem, size = 0x1000, scoped, tag = 'packed  for operand 0']
    #allocation2 [shape = 'u8[8192]{0}', space=vmem, size = 0x2000, scoped, tag = 'operand span for operand 1']
    #allocation3 [shape = 'u8[4096]{0}', space=vmem, size = 0x1000, scoped, tag = 'packed  for operand 1']
    // Predicated region
    $region2: #{reverse.1} parent=1 // pred_check
      _
    $region3: #{reverse.1} parent=1 // pred_check_branch
      %6 = sbr.rel (0) target = $region5
    $region4: #{reverse.1} parent=1 // pred_region
      // Predicated region
      $region6: #{reverse.1} parent=4 // pred_check
        _
      $region7: #{reverse.1} parent=4 // pred_check_branch
        %8 = sbr.rel target = $region9
      $region8: #{reverse.1} parent=4 // pred_region
        // Predicated region
        $region21: #{reverse.1} parent=8 // pred_check
          _
        $region22: #{reverse.1} parent=8 // pred_check_branch
          %26 = sbr.rel (0) target = $region24
        $region23: #{reverse.1} parent=8 // pred_region
          loop: start=0, step=1, limit=1
          $region25: #{reverse.1} parent=23 // loop_pre_header
            _
          $region26: #{reverse.1} parent=23 // loop_header
            %s28 = sphi 0, %s32
            %p29 = scmp.ge.s32.totalorder %s28, 1
            %s33 = sphi %s0, %s0
            %s34 = sphi [#allocation1], [#allocation1]
          $region27: #{reverse.1} parent=23 // loop_header_branch
            %31 = sbr.rel (%p29) target = $region31
          $region28: #{reverse.1} parent=23 // loop_body
            _
          $region29: #{reverse.1} parent=23 // loop_footer
            %s32 = sadd.s32 1, %s28
          $region30: #{reverse.1} parent=23 // loop_footer_branch
            %27 = sbr.rel target = $region26
          $region31: #{reverse.1} parent=23 // loop_exit
            _
          %s36 = ssub.s32 16, 1
          loop: start=0, step=1, limit=1
          $region32: #{reverse.1} parent=23 // loop_pre_header
            _
          $region33: #{reverse.1} parent=23 // loop_header
            %s38 = sphi 0, %s42
            %p39 = scmp.ge.s32.totalorder %s38, 1
            %s43 = sphi %s0, %s0
            %s44 = sphi [#allocation1], [#allocation1]
          $region34: #{reverse.1} parent=23 // loop_header_branch
            %41 = sbr.rel (%p39) target = $region38
          $region35: #{reverse.1} parent=23 // loop_body
            %v45 = vld [vmem:[%s43] sm:%s36]
            %46 = vst [vmem:[%s44] sm:%s36] %v45
            %v47 = vld [vmem:[%s43 + $0x4] sm:%s36]
            %48 = vst [vmem:[%s44 + $0x4] sm:%s36] %v47
          $region36: #{reverse.1} parent=23 // loop_footer
            %s42 = sadd.s32 1, %s38
          $region37: #{reverse.1} parent=23 // loop_footer_branch
            %37 = sbr.rel target = $region33
          $region38: #{reverse.1} parent=23 // loop_exit
            _
        $region24: #{reverse.1} parent=8 // pred_fallthru
          _
      $region9: #{reverse.1} parent=4 // pred_fallthru
        _
      // Predicated region
      $region10: #{reverse.1} parent=4 // pred_check
        _
      $region11: #{reverse.1} parent=4 // pred_check_branch
        %10 = sbr.rel (0) target = $region13
      $region12: #{reverse.1} parent=4 // pred_region
        %s12 = ssub.s32 16, 1
        loop: start=0, step=1, limit=1
        $region14: #{reverse.1} parent=12 // loop_pre_header
          _
        $region15: #{reverse.1} parent=12 // loop_header
          %s14 = sphi 0, %s18
          %p15 = scmp.ge.s32.totalorder %s14, 1
          %s19 = sphi %s0, %s0
          %s20 = sphi [#allocation1], [#allocation1]
        $region16: #{reverse.1} parent=12 // loop_header_branch
          %17 = sbr.rel (%p15) target = $region20
        $region17: #{reverse.1} parent=12 // loop_body
          %v21 = vld [vmem:[%s19] sm:%s12]
          %22 = vst [vmem:[%s20] sm:%s12] %v21
          %v23 = vld [vmem:[%s19 + $0x4] sm:%s12]
          %24 = vst [vmem:[%s20 + $0x4] sm:%s12] %v23
        $region18: #{reverse.1} parent=12 // loop_footer
          %s18 = sadd.s32 1, %s14
        $region19: #{reverse.1} parent=12 // loop_footer_branch
          %13 = sbr.rel target = $region15
        $region20: #{reverse.1} parent=12 // loop_exit
          _
      $region13: #{reverse.1} parent=4 // pred_fallthru
        _
    $region5: #{reverse.1} parent=1 // pred_fallthru
      _
    %49 = vnop
    %s51 = sshll.u32 1, 4
    %s52 = ssub.s32 %s51, 1
    %s53 = scalar_lea.vmem [#allocation1], 4
    %v54 = vld [vmem:[%s53] sm:%s52]
    %s55 = scalar_lea.vmem [#allocation0], 8
    %56 = vst [vmem:[%s55] sm:%s52] %v54
    %v57 = vld [vmem:[#allocation1] sm:%s52]
    %58 = vst [vmem:[#allocation0] sm:%s52] %v57
    %v59 = vld [vmem:[#allocation0] sm:$0xff]
    %60 = vperm.xlu0 %4, %v59
    %v61 = vpop.permute.xlu0 %60
    %62 = vst [vmem:[#allocation2] sm:$0xff] %v61
    %s63 = scalar_lea.vmem [#allocation2], 8
    %s64 = scalar_lea.vmem [#allocation0], 8
    %v65 = vld [vmem:[%s64] sm:$0xff]
    %66 = vperm.xlu0 %4, %v65
    %v67 = vpop.permute.xlu0 %66
    %68 = vst [vmem:[%s63] sm:$0xff] %v67
    %s70 = sshll.u32 1, 4
    %s71 = ssub.s32 %s70, 1
    %v73 = vld [vmem:[#allocation2] sm:%s71]
    %s74 = sshll.u32 1, 4
    %s75 = ssub.s32 %s74, 1
    %76 = vst [vmem:[#allocation3] sm:%s75] %v73
    %s77 = scalar_lea.vmem [#allocation2], 8
    %v78 = vld [vmem:[%s77] sm:%s71]
    %s79 = sshll.u32 1, 4
    %s80 = ssub.s32 %s79, 1
    %s81 = scalar_lea.vmem [#allocation3], 4
    %82 = vst [vmem:[%s81] sm:%s80] %v78
    // Predicated region
    $region39: #{reverse.1} parent=1 // pred_check
      _
    $region40: #{reverse.1} parent=1 // pred_check_branch
      %84 = sbr.rel (0) target = $region42
    $region41: #{reverse.1} parent=1 // pred_region
      // Predicated region
      $region43: #{reverse.1} parent=41 // pred_check
        _
      $region44: #{reverse.1} parent=41 // pred_check_branch
        %86 = sbr.rel target = $region46
      $region45: #{reverse.1} parent=41 // pred_region
        // Predicated region
        $region58: #{reverse.1} parent=45 // pred_check
          _
        $region59: #{reverse.1} parent=45 // pred_check_branch
          %104 = sbr.rel (0) target = $region61
        $region60: #{reverse.1} parent=45 // pred_region
          loop: start=0, step=1, limit=1
          $region62: #{reverse.1} parent=60 // loop_pre_header
            _
          $region63: #{reverse.1} parent=60 // loop_header
            %s106 = sphi 0, %s110
            %p107 = scmp.ge.s32.totalorder %s106, 1
            %s111 = sphi [#allocation3], [#allocation3]
            %s112 = sphi %s1, %s1
          $region64: #{reverse.1} parent=60 // loop_header_branch
            %109 = sbr.rel (%p107) target = $region68
          $region65: #{reverse.1} parent=60 // loop_body
            _
          $region66: #{reverse.1} parent=60 // loop_footer
            %s110 = sadd.s32 1, %s106
          $region67: #{reverse.1} parent=60 // loop_footer_branch
            %105 = sbr.rel target = $region63
          $region68: #{reverse.1} parent=60 // loop_exit
            _
          %s114 = ssub.s32 16, 1
          loop: start=0, step=1, limit=1
          $region69: #{reverse.1} parent=60 // loop_pre_header
            _
          $region70: #{reverse.1} parent=60 // loop_header
            %s116 = sphi 0, %s120
            %p117 = scmp.ge.s32.totalorder %s116, 1
            %s121 = sphi [#allocation3], [#allocation3]
            %s122 = sphi %s1, %s1
          $region71: #{reverse.1} parent=60 // loop_header_branch
            %119 = sbr.rel (%p117) target = $region75
          $region72: #{reverse.1} parent=60 // loop_body
            %v123 = vld [vmem:[%s121] sm:%s114]
            %124 = vst [vmem:[%s122] sm:%s114] %v123
            %v125 = vld [vmem:[%s121 + $0x4] sm:%s114]
            %126 = vst [vmem:[%s122 + $0x4] sm:%s114] %v125
          $region73: #{reverse.1} parent=60 // loop_footer
            %s120 = sadd.s32 1, %s116
          $region74: #{reverse.1} parent=60 // loop_footer_branch
            %115 = sbr.rel target = $region70
          $region75: #{reverse.1} parent=60 // loop_exit
            _
        $region61: #{reverse.1} parent=45 // pred_fallthru
          _
      $region46: #{reverse.1} parent=41 // pred_fallthru
        _
      // Predicated region
      $region47: #{reverse.1} parent=41 // pred_check
        _
      $region48: #{reverse.1} parent=41 // pred_check_branch
        %88 = sbr.rel (0) target = $region50
      $region49: #{reverse.1} parent=41 // pred_region
        %s90 = ssub.s32 16, 1
        loop: start=0, step=1, limit=1
        $region51: #{reverse.1} parent=49 // loop_pre_header
          _
        $region52: #{reverse.1} parent=49 // loop_header
          %s92 = sphi 0, %s96
          %p93 = scmp.ge.s32.totalorder %s92, 1
          %s97 = sphi [#allocation3], [#allocation3]
          %s98 = sphi %s1, %s1
        $region53: #{reverse.1} parent=49 // loop_header_branch
          %95 = sbr.rel (%p93) target = $region57
        $region54: #{reverse.1} parent=49 // loop_body
          %v99 = vld [vmem:[%s97] sm:%s90]
          %100 = vst [vmem:[%s98] sm:%s90] %v99
          %v101 = vld [vmem:[%s97 + $0x4] sm:%s90]
          %102 = vst [vmem:[%s98 + $0x4] sm:%s90] %v101
        $region55: #{reverse.1} parent=49 // loop_footer
          %s96 = sadd.s32 1, %s92
        $region56: #{reverse.1} parent=49 // loop_footer_branch
          %91 = sbr.rel target = $region52
        $region57: #{reverse.1} parent=49 // loop_exit
          _
      $region50: #{reverse.1} parent=41 // pred_fallthru
        _
    $region42: #{reverse.1} parent=1 // pred_fallthru
      _
    %127 = vnop

// kernel: _spectral_conv1d_vpu.1
$region0: #{_spectral_conv1d_vpu.1}
  #allocation0 [shape = 'u32[]', space=smem, size = 0x4, offset = 0x4, fixed_abs, tag = 'smem constant byte address 0x4 - core index']
  #allocation1 [shape = 'u32[144,128]{1,0:T(1,128)}', space=vmem, size = 0x12000, scoped, tag = 'internal scratch']
  %s0 = inlined_call_operand.vmem [shape: f32[2,4,8], index: 0, kind: input, shape index: {}]
  %s1 = inlined_call_operand.vmem [shape: f32[2,4,8], index: 1, kind: input, shape index: {}]
  %s2 = inlined_call_operand.vmem [shape: f32[4,4,8], index: 2, kind: input, shape index: {}]
  %s3 = inlined_call_operand.vmem [shape: f32[4,4,8], index: 3, kind: input, shape index: {}]
  %s4 = inlined_call_operand.vmem [shape: f32[2,4,8], index: 4, kind: output, shape index: {0}]
  %s5 = inlined_call_operand.vmem [shape: f32[2,4,8], index: 5, kind: output, shape index: {1}]
  %6 = xla_tuple %s4, %s5
  %s7 = sld [smem:[#allocation0]]
  $region34: #{_spectral_conv1d_vpu.1} parent=0
    _
  %s9 = ssub.s32 1, %s7
  %s10 = scalar_select 0, %s9, %s7
  // Predicated region
  $region2: #{_spectral_conv1d_vpu.1} parent=0 // pred_check
    _
  $region3: #{_spectral_conv1d_vpu.1} parent=0 // pred_check_branch
    %12 = sbr.rel (0) target = $region5
  $region4: #{_spectral_conv1d_vpu.1} parent=0 // pred_region
    _
  $region5: #{_spectral_conv1d_vpu.1} parent=0 // pred_fallthru
    _
  // Predicated region
  $region6: #{_spectral_conv1d_vpu.1} parent=0 // pred_check
    _
  $region7: #{_spectral_conv1d_vpu.1} parent=0 // pred_check_branch
    %14 = sbr.rel (0) target = $region9
  $region8: #{_spectral_conv1d_vpu.1} parent=0 // pred_region
    _
  $region9: #{_spectral_conv1d_vpu.1} parent=0 // pred_fallthru
    _
  // Predicated region
  $region10: #{_spectral_conv1d_vpu.1} parent=0 // pred_check
    _
  $region11: #{_spectral_conv1d_vpu.1} parent=0 // pred_check_branch
    %16 = sbr.rel (0) target = $region13
  $region12: #{_spectral_conv1d_vpu.1} parent=0 // pred_region
    _
  $region13: #{_spectral_conv1d_vpu.1} parent=0 // pred_fallthru
    _
  // Predicated region
  $region14: #{_spectral_conv1d_vpu.1} parent=0 // pred_check
    _
  $region15: #{_spectral_conv1d_vpu.1} parent=0 // pred_check_branch
    %18 = sbr.rel (0) target = $region17
  $region16: #{_spectral_conv1d_vpu.1} parent=0 // pred_region
    _
  $region17: #{_spectral_conv1d_vpu.1} parent=0 // pred_fallthru
    _
  %v19 = vld [vmem:[%s0] sm:$0x1]
  %v20 = vld [vmem:[%s0 + $0x4] sm:$0x1]
  %v21 = vld [vmem:[%s1] sm:$0x1]
  %v22 = vld [vmem:[%s1 + $0x4] sm:$0x1]
  %v23 = vld [vmem:[%s2] sm:$0xf]
  %v24 = vld [vmem:[%s3] sm:$0xf]
  %v25 = vlaneseq
  %v26 = vshrl.u32 %v25, 7
  %v27 = vsub.s32 0, %v26
  %v28 = vrot.slane %v19, %v27
  %v29 = vlaneseq
  %v30 = vshrl.u32 %v29, 7
  %v31 = vsub.s32 0, %v30
  %v32 = vrot.slane %v20, %v31
  %v33 = vmul.f32 %v28, %v23
  %v34 = vmul.f32 %v32, %v23
  %v35 = vlaneseq
  %v36 = vshrl.u32 %v35, 7
  %v37 = vsub.s32 0, %v36
  %v38 = vrot.slane %v21, %v37
  %v39 = vlaneseq
  %v40 = vshrl.u32 %v39, 7
  %v41 = vsub.s32 0, %v40
  %v42 = vrot.slane %v22, %v41
  %v43 = vmul.f32 %v38, %v24
  %v44 = vmul.f32 %v42, %v24
  %v45 = vsub.f32 %v33, %v43
  %v46 = vsub.f32 %v34, %v44
  %v47 = vadd.f32 %v45, 0.0
  %v48 = vadd.f32 %v46, 0.0
  %v49 = vmul.f32 %v28, %v24
  %v50 = vmul.f32 %v32, %v24
  %v51 = vmul.f32 %v38, %v23
  %v52 = vmul.f32 %v42, %v23
  %v53 = vadd.f32 %v49, %v51
  %v54 = vadd.f32 %v50, %v52
  %v55 = vadd.f32 %v53, 0.0
  %v56 = vadd.f32 %v54, 0.0
  %v57 = vld [vmem:[%s0 + $0x1] sm:$0x1]
  %v58 = vld [vmem:[%s0 + $0x5] sm:$0x1]
  %v59 = vld [vmem:[%s1 + $0x1] sm:$0x1]
  %v60 = vld [vmem:[%s1 + $0x5] sm:$0x1]
  %s61 = scalar_lea.vmem %s2, 4
  %v62 = vld [vmem:[%s61] sm:$0xf]
  %s63 = scalar_lea.vmem %s3, 4
  %v64 = vld [vmem:[%s63] sm:$0xf]
  %v65 = vlaneseq
  %v66 = vshrl.u32 %v65, 7
  %v67 = vsub.s32 0, %v66
  %v68 = vrot.slane %v57, %v67
  %v69 = vlaneseq
  %v70 = vshrl.u32 %v69, 7
  %v71 = vsub.s32 0, %v70
  %v72 = vrot.slane %v58, %v71
  %v73 = vmul.f32 %v68, %v62
  %v74 = vmul.f32 %v72, %v62
  %v75 = vlaneseq
  %v76 = vshrl.u32 %v75, 7
  %v77 = vsub.s32 0, %v76
  %v78 = vrot.slane %v59, %v77
  %v79 = vlaneseq
  %v80 = vshrl.u32 %v79, 7
  %v81 = vsub.s32 0, %v80
  %v82 = vrot.slane %v60, %v81
  %v83 = vmul.f32 %v78, %v64
  %v84 = vmul.f32 %v82, %v64
  %v85 = vsub.f32 %v73, %v83
  %v86 = vsub.f32 %v74, %v84
  %v87 = vadd.f32 %v47, %v85
  %v88 = vadd.f32 %v48, %v86
  %v89 = vmul.f32 %v68, %v64
  %v90 = vmul.f32 %v72, %v64
  %v91 = vmul.f32 %v78, %v62
  %v92 = vmul.f32 %v82, %v62
  %v93 = vadd.f32 %v89, %v91
  %v94 = vadd.f32 %v90, %v92
  %v95 = vadd.f32 %v55, %v93
  %v96 = vadd.f32 %v56, %v94
  %v97 = vld [vmem:[%s0 + $0x2] sm:$0x1]
  %v98 = vld [vmem:[%s0 + $0x6] sm:$0x1]
  %v99 = vld [vmem:[%s1 + $0x2] sm:$0x1]
  %v100 = vld [vmem:[%s1 + $0x6] sm:$0x1]
  %s101 = scalar_lea.vmem %s2, 8
  %v102 = vld [vmem:[%s101] sm:$0xf]
  %s103 = scalar_lea.vmem %s3, 8
  %v104 = vld [vmem:[%s103] sm:$0xf]
  %v105 = vlaneseq
  %v106 = vshrl.u32 %v105, 7
  %v107 = vsub.s32 0, %v106
  %v108 = vrot.slane %v97, %v107
  %v109 = vlaneseq
  %v110 = vshrl.u32 %v109, 7
  %v111 = vsub.s32 0, %v110
  %v112 = vrot.slane %v98, %v111
  %v113 = vmul.f32 %v108, %v102
  %v114 = vmul.f32 %v112, %v102
  %v115 = vlaneseq
  %v116 = vshrl.u32 %v115, 7
  %v117 = vsub.s32 0, %v116
  %v118 = vrot.slane %v99, %v117
  %v119 = vlaneseq
  %v120 = vshrl.u32 %v119, 7
  %v121 = vsub.s32 0, %v120
  %v122 = vrot.slane %v100, %v121
  %v123 = vmul.f32 %v118, %v104
  %v124 = vmul.f32 %v122, %v104
  %v125 = vsub.f32 %v113, %v123
  %v126 = vsub.f32 %v114, %v124
  %v127 = vadd.f32 %v87, %v125
  %v128 = vadd.f32 %v88, %v126
  %v129 = vmul.f32 %v108, %v104
  %v130 = vmul.f32 %v112, %v104
  %v131 = vmul.f32 %v118, %v102
  %v132 = vmul.f32 %v122, %v102
  %v133 = vadd.f32 %v129, %v131
  %v134 = vadd.f32 %v130, %v132
  %v135 = vadd.f32 %v95, %v133
  %v136 = vadd.f32 %v96, %v134
  %v137 = vld [vmem:[%s0 + $0x3] sm:$0x1]
  %v138 = vld [vmem:[%s0 + $0x7] sm:$0x1]
  %v139 = vld [vmem:[%s1 + $0x3] sm:$0x1]
  %v140 = vld [vmem:[%s1 + $0x7] sm:$0x1]
  %s141 = scalar_lea.vmem %s2, 12
  %v142 = vld [vmem:[%s141] sm:$0xf]
  %s143 = scalar_lea.vmem %s3, 12
  %v144 = vld [vmem:[%s143] sm:$0xf]
  %v145 = vlaneseq
  %v146 = vshrl.u32 %v145, 7
  %v147 = vsub.s32 0, %v146
  %v148 = vrot.slane %v137, %v147
  %v149 = vlaneseq
  %v150 = vshrl.u32 %v149, 7
  %v151 = vsub.s32 0, %v150
  %v152 = vrot.slane %v138, %v151
  %v153 = vmul.f32 %v148, %v142
  %v154 = vmul.f32 %v152, %v142
  %v155 = vlaneseq
  %v156 = vshrl.u32 %v155, 7
  %v157 = vsub.s32 0, %v156
  %v158 = vrot.slane %v139, %v157
  %v159 = vlaneseq
  %v160 = vshrl.u32 %v159, 7
  %v161 = vsub.s32 0, %v160
  %v162 = vrot.slane %v140, %v161
  %v163 = vmul.f32 %v158, %v144
  %v164 = vmul.f32 %v162, %v144
  %v165 = vsub.f32 %v153, %v163
  %v166 = vsub.f32 %v154, %v164
  %v167 = vadd.f32 %v127, %v165
  %v168 = vadd.f32 %v128, %v166
  %v169 = vmul.f32 %v148, %v144
  %v170 = vmul.f32 %v152, %v144
  %v171 = vmul.f32 %v158, %v142
  %v172 = vmul.f32 %v162, %v142
  %v173 = vadd.f32 %v169, %v171
  %v174 = vadd.f32 %v170, %v172
  %v175 = vadd.f32 %v135, %v173
  %v176 = vadd.f32 %v136, %v174
  %vm177 = vcmask 60416
  %178 = vst.msk [vmem:[%s4] sm:$0xf] %vm177, %v167
  %179 = vst.msk [vmem:[%s4 + $0x4] sm:$0xf] %vm177, %v168
  %180 = vst.msk [vmem:[%s5] sm:$0xf] %vm177, %v175
  %181 = vst.msk [vmem:[%s5 + $0x4] sm:$0xf] %vm177, %v176
  // Predicated region
  $region18: #{_spectral_conv1d_vpu.1} parent=0 // pred_check
    _
  $region19: #{_spectral_conv1d_vpu.1} parent=0 // pred_check_branch
    %183 = sbr.rel (0) target = $region21
  $region20: #{_spectral_conv1d_vpu.1} parent=0 // pred_region
    _
  $region21: #{_spectral_conv1d_vpu.1} parent=0 // pred_fallthru
    _
  // Predicated region
  $region22: #{_spectral_conv1d_vpu.1} parent=0 // pred_check
    _
  $region23: #{_spectral_conv1d_vpu.1} parent=0 // pred_check_branch
    %185 = sbr.rel (0) target = $region25
  $region24: #{_spectral_conv1d_vpu.1} parent=0 // pred_region
    _
  $region25: #{_spectral_conv1d_vpu.1} parent=0 // pred_fallthru
    _
  // Predicated region
  $region26: #{_spectral_conv1d_vpu.1} parent=0 // pred_check
    _
  $region27: #{_spectral_conv1d_vpu.1} parent=0 // pred_check_branch
    %187 = sbr.rel (0) target = $region29
  $region28: #{_spectral_conv1d_vpu.1} parent=0 // pred_region
    _
  $region29: #{_spectral_conv1d_vpu.1} parent=0 // pred_fallthru
    _
  // Predicated region
  $region30: #{_spectral_conv1d_vpu.1} parent=0 // pred_check
    _
  $region31: #{_spectral_conv1d_vpu.1} parent=0 // pred_check_branch
    %189 = sbr.rel (0) target = $region33
  $region32: #{_spectral_conv1d_vpu.1} parent=0 // pred_region
    _
  $region33: #{_spectral_conv1d_vpu.1} parent=0 // pred_fallthru
    _

</llo_original>
